<compile_context>
chip_gen: v6e
topology: v6e:2x2x1
jax: 0.10.0
libtpu: 0.0.40
codegen_flags: <defaults>
</compile_context>

<pallas_src>
import functools

import jax
import jax.numpy as jnp
from jax.experimental import pallas as pl
from jax.experimental.pallas import tpu as pltpu

LANES = 128
MAX_TILE_ROWS = 4096  # 4096 x 128 f32 = 2 MiB per input tile


def _simmax_kernel(x_ref, w_ref, out_ref, *, margin, tile_rows, total_rows,
                   needs_row_mask):
    i = pl.program_id(0)

    @pl.when(i == 0)
    def _():
        out_ref[...] = jnp.zeros_like(out_ref)

    x = x_ref[...].astype(jnp.float32)
    w = w_ref[...].astype(jnp.float32)
    x = jnp.clip(x, 0.0001, 0.9999)
    if margin != 0.0:  # static Python branch: skip the add when margin == 0
        x = x + jnp.float32(margin)
    val = jnp.log(x) * w

    if needs_row_mask:
        # The last tile extends past the (rows, 128) array; rows read out of
        # bounds are unspecified (possibly NaN), so zero their contribution.
        row = i * tile_rows + jax.lax.broadcasted_iota(
            jnp.int32, (tile_rows, 1), 0)
        val = jnp.where(row < total_rows, val, 0.0)

    # Fold (tile_rows, 128) -> (8, 128) with pure VPU adds (layout preserving)
    # directly into the resident output block.
    out_ref[...] += val.reshape(tile_rows // 8, 8, LANES).sum(axis=0)


def sim_max_loss(x, weights, margin=0.0, *, max_tile_rows=MAX_TILE_ROWS):
    assert x.shape == weights.shape, (x.shape, weights.shape)
    assert max_tile_rows % 8 == 0
    margin = float(margin)
    # log argument must stay positive (same constraint as the PyTorch module).
    assert 0.0001 + margin > 0.0, "margin too negative: log() would be NaN/-inf"
    n_elems = x.size
    assert n_elems > 0

    if x.ndim == 2 and x.shape[1] == LANES:
        # Zero-copy fast path: already lane-shaped (M, 128).
        x2, w2 = x, weights
    else:
        xf = jnp.ravel(x)
        wf = jnp.ravel(weights)
        rem = n_elems % LANES
        if rem:
            # Ragged tail: pad only up to the next lane multiple with neutral
            # values (x=1.0 clamps to 0.9999, w=0.0) so padded elements
            # contribute exactly 0 to the sum.
            pad = LANES - rem
            xf = jnp.pad(xf, (0, pad), constant_values=1.0)
            wf = jnp.pad(wf, (0, pad), constant_values=0.0)
        x2 = xf.reshape(-1, LANES)
        w2 = wf.reshape(-1, LANES)

    rows = x2.shape[0]
    tile_rows = min(max_tile_rows, ((rows + 7) // 8) * 8)
    num_tiles = pl.cdiv(rows, tile_rows)
    needs_row_mask = (num_tiles * tile_rows) != rows  # static Python bool

    kernel = functools.partial(
        _simmax_kernel, margin=margin, tile_rows=tile_rows,
        total_rows=rows, needs_row_mask=needs_row_mask)

    partial_sums = pl.pallas_call(
        kernel,
        out_shape=jax.ShapeDtypeStruct((8, LANES), jnp.float32),
        grid_spec=pltpu.PrefetchScalarGridSpec(
            num_scalar_prefetch=0,
            grid=(num_tiles,),
            in_specs=[
                pl.BlockSpec((tile_rows, LANES), lambda i: (i, 0)),
                pl.BlockSpec((tile_rows, LANES), lambda i: (i, 0)),
            ],
            out_specs=pl.BlockSpec((8, LANES), lambda i: (0, 0)),
        ),
        compiler_params=pltpu.CompilerParams(
            dimension_semantics=("arbitrary",),
            vmem_limit_bytes=48 * 1024 * 1024,
        ),
    )(x2, w2)

    # Final tiny reduction + negate + mean in the wrapper (8*128 floats).
    return -jnp.sum(partial_sums) / jnp.float32(n_elems)


def sim_max_loss_ref(x, weights, margin=0.0):
    x = jnp.clip(x.astype(jnp.float32), 0.0001, 0.9999)
    return -jnp.mean(jnp.log(x + margin) * weights.astype(jnp.float32))


if __name__ == "__main__":
    key = jax.random.PRNGKey(0)

    # Small NCHW-shaped activations in (0,1) plus per-element weights.
    kx, kw = jax.random.split(key)
    x = jax.random.uniform(kx, (2, 4, 16, 16), dtype=jnp.float32)
    weights = jax.random.uniform(kw, (2, 4, 16, 16), dtype=jnp.float32)

    out = jax.block_until_ready(sim_max_loss(x, weights, margin=0.0))
    ref = sim_max_loss_ref(x, weights, margin=0.0)
    assert jnp.allclose(out, ref, rtol=1e-5, atol=1e-5), (out, ref)

    # Non-zero margin path.
    out_m = jax.block_until_ready(sim_max_loss(x, weights, margin=0.1))
    ref_m = sim_max_loss_ref(x, weights, margin=0.1)
    assert jnp.allclose(out_m, ref_m, rtol=1e-5, atol=1e-5), (out_m, ref_m)

    # bf16 inputs (in-kernel cast path).
    out_b = jax.block_until_ready(
        sim_max_loss(x.astype(jnp.bfloat16), weights.astype(jnp.bfloat16)))
    ref_b = sim_max_loss_ref(x.astype(jnp.bfloat16), weights.astype(jnp.bfloat16))
    assert jnp.allclose(out_b, ref_b, rtol=1e-5, atol=1e-5), (out_b, ref_b)

    # Pre-flattened (M, 128) zero-copy fast path; multi-tile grid with a
    # ragged last tile (exercises the in-kernel row mask + accumulator).
    kx2, kw2 = jax.random.split(jax.random.PRNGKey(1))
    xl = jax.random.uniform(kx2, (4104, 128), dtype=jnp.float32)
    wl = jax.random.uniform(kw2, (4104, 128), dtype=jnp.float32)
    out_l = jax.block_until_ready(sim_max_loss(xl, wl, margin=0.0))
    ref_l = sim_max_loss_ref(xl, wl, margin=0.0)
    assert jnp.allclose(out_l, ref_l, rtol=1e-5, atol=1e-5), (out_l, ref_l)

    # Ragged element count (lane-tail pad + row mask path).
    kx3, kw3 = jax.random.split(jax.random.PRNGKey(2))
    xr = jax.random.uniform(kx3, (3, 5, 17, 31), dtype=jnp.float32)
    wr = jax.random.uniform(kw3, (3, 5, 17, 31), dtype=jnp.float32)
    out_r = jax.block_until_ready(sim_max_loss(xr, wr, margin=0.0))
    ref_r = sim_max_loss_ref(xr, wr, margin=0.0)
    assert jnp.allclose(out_r, ref_r, rtol=1e-5, atol=1e-5), (out_r, ref_r)

    print("KERNEL_OK")
</pallas_src>

<mosaic_0001>
module attributes {stable_mosaic.version = 11 : i64} {
  func.func @_simmax_kernel(%arg0: i32, %arg1: memref<16x128xf32, #tpu.memory_space<vmem>>, %arg2: memref<16x128xf32, #tpu.memory_space<vmem>>, %arg3: memref<8x128xf32, #tpu.memory_space<vmem>>) attributes {dimension_semantics = [#tpu.dimension_semantics<arbitrary>], iteration_bounds = array<i64: 1>, scalar_prefetch = 0 : i64, scratch_operands = 0 : i64, tpu.core_type = #tpu.core_type<tc>, window_params = [{transform_indices = @transform_0, window_bounds = array<i64: 16, 128>}, {transform_indices = @transform_1, window_bounds = array<i64: 16, 128>}, {pipeline_mode = #tpu.pipeline_mode<synchronous>, transform_indices = @transform_2, window_bounds = array<i64: 8, 128>}]} {
    %c0_i32 = arith.constant 0 : i32
    %0 = arith.cmpi eq, %arg0, %c0_i32 : i32
    %1 = arith.extui %0 : i1 to i32
    %c0_i32_0 = arith.constant 0 : i32
    %2 = arith.cmpi ne, %1, %c0_i32_0 : i32
    scf.if %2 {
      %cst_10 = arith.constant 0.000000e+00 : f32
      %16 = vector.broadcast %cst_10 : f32 to vector<8x128xf32>
      %c0_11 = arith.constant 0 : index
      %c0_12 = arith.constant 0 : index
      %17 = vector.load %arg3[%c0_11, %c0_12] : memref<8x128xf32, #tpu.memory_space<vmem>>, vector<8x128xf32>
      tpu.vector_store %arg3[%c0_11, %c0_12], %16 {strides = array<i32>} : memref<8x128xf32, #tpu.memory_space<vmem>>, vector<8x128xf32>,
    } else {
    }
    %c0 = arith.constant 0 : index
    %c0_1 = arith.constant 0 : index
    %3 = vector.load %arg1[%c0, %c0_1] : memref<16x128xf32, #tpu.memory_space<vmem>>, vector<16x128xf32>
    %c0_2 = arith.constant 0 : index
    %c0_3 = arith.constant 0 : index
    %4 = vector.load %arg2[%c0_2, %c0_3] : memref<16x128xf32, #tpu.memory_space<vmem>>, vector<16x128xf32>
    %cst = arith.constant 9.99999974E-5 : f32
    %cst_4 = arith.constant 0.999899983 : f32
    %5 = vector.broadcast %cst : f32 to vector<16x128xf32>
    %6 = arith.maximumf %5, %3 : vector<16x128xf32>
    %7 = vector.broadcast %cst_4 : f32 to vector<16x128xf32>
    %8 = arith.minimumf %7, %6 : vector<16x128xf32>
    %9 = math.log %8 : vector<16x128xf32>
    %10 = arith.mulf %9, %4 : vector<16x128xf32>
    %c0_5 = arith.constant 0 : index
    %c0_6 = arith.constant 0 : index
    %11 = vector.load %arg3[%c0_5, %c0_6] : memref<8x128xf32, #tpu.memory_space<vmem>>, vector<8x128xf32>
    %12 = vector.shape_cast %10 : vector<16x128xf32> to vector<2x8x128xf32>
    %cst_7 = arith.constant dense<0.000000e+00> : vector<8x128xf32>
    %13 = vector.multi_reduction <add>, %12, %cst_7 [0] : vector<2x8x128xf32> to vector<8x128xf32>
    %14 = arith.addf %11, %13 : vector<8x128xf32>
    %c0_8 = arith.constant 0 : index
    %c0_9 = arith.constant 0 : index
    %15 = vector.load %arg3[%c0_8, %c0_9] : memref<8x128xf32, #tpu.memory_space<vmem>>, vector<8x128xf32>
    tpu.vector_store %arg3[%c0_8, %c0_9], %14 {strides = array<i32>} : memref<8x128xf32, #tpu.memory_space<vmem>>, vector<8x128xf32>,
    return
  }
  func.func @transform_0(%arg0: i32) -> (i32, i32) {
    %c0_i32 = arith.constant 0 : i32
    %c0_i32_0 = arith.constant 0 : i32
    return %arg0, %c0_i32 : i32, i32
  }
  func.func @transform_1(%arg0: i32) -> (i32, i32) {
    %c0_i32 = arith.constant 0 : i32
    %c0_i32_0 = arith.constant 0 : i32
    return %arg0, %c0_i32 : i32, i32
  }
  func.func @transform_2(%arg0: i32) -> (i32, i32) {
    %c0_i32 = arith.constant 0 : i32
    %c0_i32_0 = arith.constant 0 : i32
    %c0_i32_1 = arith.constant 0 : i32
    return %c0_i32, %c0_i32_0 : i32, i32
  }
}

</mosaic_0001>

<llo_original>
// kernel: tpu_custom_call.1
$region0: #{tpu_custom_call.1}
  #allocation0 [shape = 'u32[]', space=smem, size = 0x4, offset = 0x4, fixed_abs, tag = 'smem constant byte address 0x4 - core index']
  #allocation1 [shape = 'u32[144,128]{1,0:T(1,128)}', space=vmem, size = 0x12000, scoped, tag = 'internal scratch']
  %s0 = inlined_call_operand.hbm [shape: f32[16,128], index: 0, kind: input, shape index: {}]
  %s1 = inlined_call_operand.hbm [shape: f32[16,128], index: 1, kind: input, shape index: {}]
  %s2 = inlined_call_operand.hbm [shape: f32[8,128], index: 2, kind: output, shape index: {}]
  %s3 = sld [smem:[#allocation0]]
  $region30: #{tpu_custom_call.1} parent=0
    _
  %s5 = ssub.s32 1, %s3
  %s6 = scalar_select 0, %s5, %s3
  $region1: #{tpu_custom_call.1} parent=0
    #allocation2 [shape = 'u8[8192]{0}', space=vmem, size = 0x2000, scoped, tag = 'input window, operand 0, single buffered']
    #allocation3 [shape = 's32[1]{0}', space=sflag, size = 0x4, scoped, tag = 'scoped memory for tpu_custom_call.1']
    #allocation4 [shape = 's32[1]{0}', space=sflag, size = 0x4, scoped, tag = 'scoped memory for tpu_custom_call.1']
    #allocation5 [shape = 'u8[8192]{0}', space=vmem, size = 0x2000, scoped, tag = 'input window, operand 1, single buffered']
    #allocation6 [shape = 's32[1]{0}', space=sflag, size = 0x4, scoped, tag = 'scoped memory for tpu_custom_call.1']
    #allocation7 [shape = 'u8[4096]{0}', space=vmem, size = 0x1000, scoped, tag = 'output window, operand 0, single buffered']
    %7 = vsyncpa [#allocation3], 0
    %8 = vsyncpa [#allocation6], 0
    %9 = vsyncpa [#allocation4], 0
    // Predicated region
    $region2: #{tpu_custom_call.1} parent=1 // pred_check
      _
    $region3: #{tpu_custom_call.1} parent=1 // pred_check_branch
      %11 = sbr.rel (0) target = $region5
    $region4: #{tpu_custom_call.1} parent=1 // pred_region
      %s13 = ssub.s32 256, 256
      %14 = vsyncadd [#allocation3], %s13
      %s15 = sshll.u32 [#allocation2], 4
      %s16 = int_to_ptr.vmem [resolvable:$true] %s15
      %21 = dma.hbm_to_vmem [thread:$0]  %s0, 256, %s16, [#allocation3], 128, 128, 8
    $region5: #{tpu_custom_call.1} parent=1 // pred_fallthru
      _
    // Predicated region
    $region6: #{tpu_custom_call.1} parent=1 // pred_check
      _
    $region7: #{tpu_custom_call.1} parent=1 // pred_check_branch
      %23 = sbr.rel (0) target = $region9
    $region8: #{tpu_custom_call.1} parent=1 // pred_region
      %s25 = ssub.s32 256, 256
      %26 = vsyncadd [#allocation6], %s25
      %s27 = sshll.u32 [#allocation5], 4
      %s28 = int_to_ptr.vmem [resolvable:$true] %s27
      %33 = dma.hbm_to_vmem [thread:$0]  %s1, 256, %s28, [#allocation6], 128, 128, 8
    $region9: #{tpu_custom_call.1} parent=1 // pred_fallthru
      _
    // Predicated region
    $region10: #{tpu_custom_call.1} parent=1 // pred_check
      _
    $region11: #{tpu_custom_call.1} parent=1 // pred_check_branch
      %35 = sbr.rel (0) target = $region13
    $region12: #{tpu_custom_call.1} parent=1 // pred_region
      %36 = dma.done [#allocation3], 256
    $region13: #{tpu_custom_call.1} parent=1 // pred_fallthru
      _
    // Predicated region
    $region14: #{tpu_custom_call.1} parent=1 // pred_check
      _
    $region15: #{tpu_custom_call.1} parent=1 // pred_check_branch
      %38 = sbr.rel (0) target = $region17
    $region16: #{tpu_custom_call.1} parent=1 // pred_region
      %39 = dma.done [#allocation6], 256
    $region17: #{tpu_custom_call.1} parent=1 // pred_fallthru
      _
    %p40 = scmp.eq.s32.totalorder 0, 0
    // Predicated region
    $region18: #{tpu_custom_call.1} parent=1 // pred_check
      %p41 = pneg %p40
    $region19: #{tpu_custom_call.1} parent=1 // pred_check_branch
      %43 = sbr.rel (%p41) target = $region21
    $region20: #{tpu_custom_call.1} parent=1 // pred_region
      %44 = vst [vmem:[#allocation7] sm:$0xff] 0.0
    $region21: #{tpu_custom_call.1} parent=1 // pred_fallthru
      _
    %v45 = vld [vmem:[#allocation2] sm:$0xff]
    %v46 = vld [vmem:[#allocation2 + $0x8] sm:$0xff]
    %v47 = vld [vmem:[#allocation5] sm:$0xff]
    %v48 = vld [vmem:[#allocation5 + $0x8] sm:$0xff]
    %v49 = vmax.f32 %v45, 0.0001
    %v50 = vmax.f32 %v46, 0.0001
    %v51 = vmin.f32 %v49, 0.9999
    %v52 = vmin.f32 %v50, 0.9999
    %v53 = vlog2.pop %v51
    %v54 = vmul.f32 %v53, 0.6931472
    %v55 = vlog2.pop %v52
    %v56 = vmul.f32 %v55, 0.6931472
    %v57 = vmul.f32 %v54, %v47
    %v58 = vmul.f32 %v56, %v48
    %v59 = vld [vmem:[#allocation7] sm:$0xff]
    %v60 = vadd.f32 %v57, %v58
    %v61 = vadd.f32 %v59, %v60
    %62 = vst [vmem:[#allocation7] sm:$0xff] %v61
    // Predicated region
    $region22: #{tpu_custom_call.1} parent=1 // pred_check
      _
    $region23: #{tpu_custom_call.1} parent=1 // pred_check_branch
      %64 = sbr.rel (0) target = $region25
    $region24: #{tpu_custom_call.1} parent=1 // pred_region
      %s66 = ssub.s32 128, 128
      %67 = vsyncadd [#allocation4], %s66
      %s69 = sshll.u32 [#allocation7], 4
      %s70 = int_to_ptr.vmem [resolvable:$true] %s69
      %72 = dma.vmem_to_hbm [thread:$0]  %s70, 128, %s2, [#allocation4]
    $region25: #{tpu_custom_call.1} parent=1 // pred_fallthru
      _
    // Predicated region
    $region26: #{tpu_custom_call.1} parent=1 // pred_check
      _
    $region27: #{tpu_custom_call.1} parent=1 // pred_check_branch
      %74 = sbr.rel (0) target = $region29
    $region28: #{tpu_custom_call.1} parent=1 // pred_region
      %75 = dma.done [#allocation4], 128
    $region29: #{tpu_custom_call.1} parent=1 // pred_fallthru
      _
    %76 = vsyncpa [#allocation3], 1
    %77 = vsyncpa [#allocation6], 1
    %78 = vsyncpa [#allocation4], 1

</llo_original>
